<compile_context>
chip_gen: v7x
topology: tpu7x:2x2x1
jax: 0.10.0
libtpu: 0.0.40
codegen_flags: <defaults>
</compile_context>

<pallas_src>
import functools

import jax
import jax.numpy as jnp
from jax.experimental import pallas as pl
from jax.experimental.pallas import tpu as pltpu

# ---- static problem sizes (consistent with the module) ----
NUM_METAPATHS = 3                       # M
NUM_NODES     = 8                       # N (target nodes per metapath)
NUM_HEADS     = 4
OUT_DIM       = 8
FEAT_DIM      = NUM_HEADS * OUT_DIM     # F = 32
ATTN_VEC_DIM  = 16                      # A

MP_WIDTH  = NUM_NODES * FEAT_DIM        # 256 lanes per metapath block
X_WIDTH   = NUM_METAPATHS * MP_WIDTH    # 768 lanes per batch row
FC1_WIDTH = NUM_NODES * ATTN_VEC_DIM    # 128 lanes after block-diag fc1

# packed-params row offsets (each section starts on a sublane-aligned row)
W1_ROWS = MP_WIDTH                      # rows 0..255   : block-diag fc1 weight
B1_ROW  = W1_ROWS                       # row 256       : fc1 bias (tiled over nodes)
W2_ROW  = B1_ROW + 8                    # row 264       : fc2 weight (tiled, * 1/N)
P_ROWS  = W2_ROW + 8                    # 272 total rows

assert MP_WIDTH % 128 == 0, "per-metapath lane slice must be 128-aligned"


def _elu(x):
    # ELU (alpha=1) with a clamped exp argument (inf-free unselected branch);
    # differs from expm1 by ~1e-7 absolute, well inside the 1e-4 tolerance.
    return jnp.where(x > 0, x, jnp.exp(jnp.minimum(x, 0.0)) - 1.0)


def multi_semantic_kernel(x_ref, p_ref, o_ref):
    """x_ref: [B_T, M*N*F]   batch tile, lane-dense (lane = m*N*F + n*F + f)
       p_ref: [P_ROWS, N*A]  packed params (block-diag fc1 / bias / fc2), resident
       o_ref: [B_T, N*F]     lane-dense output tile (lane = n*F + f)
    """
    w1n = p_ref[0:W1_ROWS, :]            # [N*F, N*A] node-block-diagonal fc1 weight
    b1n = p_ref[B1_ROW:B1_ROW + 1, :]    # [1, N*A]   fc1 bias tiled over nodes
    w2n = p_ref[W2_ROW:W2_ROW + 1, :]    # [1, N*A]   fc2 weight tiled over nodes, *1/N

    # Single read of x, single ELU. Per-metapath lane slices are 128-aligned
    # (width N*F = 256) and therefore free vreg-column selections.
    xs = [_elu(x_ref[:, m * MP_WIDTH:(m + 1) * MP_WIDTH])
          for m in range(NUM_METAPATHS)]                      # M x [B_T, N*F]

    # fc1 (block-diag over nodes) + tanh + fused fc2/mean -> one logit column
    # per metapath.  Batch rows fill the MXU (K = N*F = 256).
    zs = []
    for xm in xs:
        tm = jnp.tanh(
            jnp.dot(xm, w1n, preferred_element_type=jnp.float32) + b1n)  # [B_T, N*A]
        zs.append(jnp.sum(tm * w2n, axis=1, keepdims=True))              # [B_T, 1]

    # Softmax over metapaths, held as separate [B_T,1] lane columns (no sublane
    # extracts); exact divide — the approximate reciprocal buys nothing here.
    zmax = functools.reduce(jnp.maximum, zs)
    es = [jnp.exp(z - zmax) for z in zs]
    inv = 1.0 / functools.reduce(lambda a, b: a + b, es)

    # Beta-weighted sum over metapaths; output stays lane-dense (2 full vregs/row).
    h = xs[0] * (es[0] * inv)
    for m in range(1, NUM_METAPATHS):
        h = h + xs[m] * (es[m] * inv)
    o_ref[...] = h


def _pack_params(w1, b1, w2):
    """Pack fc1/fc2 parameters into one VMEM-resident buffer [P_ROWS, N*A]."""
    w1t = jnp.asarray(w1, jnp.float32).T                                   # [F, A]
    w1n = jnp.kron(jnp.eye(NUM_NODES, dtype=jnp.float32), w1t)             # [N*F, N*A]
    p = jnp.zeros((P_ROWS, FC1_WIDTH), jnp.float32)
    p = p.at[0:W1_ROWS, :].set(w1n)
    p = p.at[B1_ROW, :].set(jnp.tile(jnp.asarray(b1, jnp.float32), NUM_NODES))
    p = p.at[W2_ROW, :].set(
        jnp.tile(jnp.asarray(w2, jnp.float32).reshape(-1), NUM_NODES) / NUM_NODES)
    return p


def multi_semantic_forward(metapath_feats, w1, b1, w2, *, block_b=128):
    """metapath_feats: [B, M, N, F] per-metapath node features (pre-ELU), f32
       w1: [A, F] fc1.weight   b1: [A] fc1.bias   w2: [1, A] fc2.weight
       returns h: [B, N, F]
    """
    B = metapath_feats.shape[0]
    assert metapath_feats.shape[1:] == (NUM_METAPATHS, NUM_NODES, FEAT_DIM)
    assert block_b % 8 == 0

    # Free row-major reshape to the lane-dense 2-D layout the kernel consumes.
    x2d = jnp.asarray(metapath_feats, jnp.float32).reshape(B, X_WIDTH)

    # Pad the batch to a multiple of the batch tile (padded rows are zeros;
    # their softmax is well-defined and they are sliced off afterwards).
    b_pad = pl.cdiv(B, block_b) * block_b
    if b_pad != B:
        x2d = jnp.pad(x2d, ((0, b_pad - B), (0, 0)))

    params = _pack_params(w1, b1, w2)

    h2d = pl.pallas_call(
        multi_semantic_kernel,
        out_shape=jax.ShapeDtypeStruct((b_pad, MP_WIDTH), jnp.float32),
        grid=(b_pad // block_b,),
        in_specs=[
            pl.BlockSpec((block_b, X_WIDTH), lambda i: (i, 0)),    # batch tile
            pl.BlockSpec((P_ROWS, FC1_WIDTH), lambda i: (0, 0)),   # resident params
        ],
        out_specs=pl.BlockSpec((block_b, MP_WIDTH), lambda i: (i, 0)),
        compiler_params=pltpu.CompilerParams(
            dimension_semantics=("parallel",)),                    # v7x: 2 TCs
    )(x2d, params)

    return h2d[:B].reshape(B, NUM_NODES, FEAT_DIM)


def _reference_forward(metapath_feats, w1, b1, w2):
    """Pure-JAX reference of the same math (torch-equivalent ELU / softmax)."""
    xe = jax.nn.elu(metapath_feats)                                   # [B,M,N,F]
    fc1 = jnp.tanh(jnp.einsum('bmnf,af->bmna', xe, w1) + b1)          # [B,M,N,A]
    logits = jnp.einsum('bma,a->bm', jnp.mean(fc1, axis=2), w2[0])    # [B,M]
    beta = jax.nn.softmax(logits, axis=1)                             # [B,M]
    return jnp.einsum('bm,bmnf->bnf', beta, xe)                       # [B,N,F]


def _xavier_normal(key, shape, gain):
    fan_out, fan_in = shape
    std = gain * (2.0 / (fan_in + fan_out)) ** 0.5
    return std * jax.random.normal(key, shape, dtype=jnp.float32)


if __name__ == "__main__":
    key = jax.random.PRNGKey(0)
    k_x, k_w1, k_b1, k_w2 = jax.random.split(key, 4)

    # A small batch of independent multi_semantic problems folded into one call
    # (what the single_semantic layers would emit for the target nodes, pre-ELU).
    BATCH = 50
    metapath_feats = jax.random.normal(
        k_x, (BATCH, NUM_METAPATHS, NUM_NODES, FEAT_DIM), dtype=jnp.float32)

    # Deterministic parameter init mirroring the module's shapes/init.
    w1 = _xavier_normal(k_w1, (ATTN_VEC_DIM, FEAT_DIM), gain=1.414)   # fc1.weight
    b1 = 0.1 * jax.random.normal(k_b1, (ATTN_VEC_DIM,), jnp.float32)  # fc1.bias
    w2 = _xavier_normal(k_w2, (1, ATTN_VEC_DIM), gain=1.414)          # fc2.weight

    # block_b=32 exercises a multi-step grid plus the batch-padding path at this
    # small demo size; at production batch sizes leave the default (128+).
    h = multi_semantic_forward(metapath_feats, w1, b1, w2, block_b=32)
    h = jax.block_until_ready(h)

    h_ref = _reference_forward(metapath_feats, w1, b1, w2)
    assert h.shape == (BATCH, NUM_NODES, FEAT_DIM)
    # 1e-4 tolerance: exp(min(x,0))-1 ELU variant and MXU f32 accumulation order.
    assert jnp.allclose(h, h_ref, atol=1e-4, rtol=1e-4)

    print("KERNEL_OK")
</pallas_src>

<mosaic_0001>
module attributes {stable_mosaic.version = 11 : i64} {
  func.func @multi_semantic_kernel(%arg0: i32, %arg1: memref<32x768xf32, #tpu.memory_space<vmem>>, %arg2: memref<272x128xf32, #tpu.memory_space<vmem>>, %arg3: memref<32x256xf32, #tpu.memory_space<vmem>>) attributes {dimension_semantics = [#tpu.dimension_semantics<parallel>], iteration_bounds = array<i64: 2>, scalar_prefetch = 0 : i64, scratch_operands = 0 : i64, tpu.core_type = #tpu.core_type<tc>, window_params = [{transform_indices = @transform_0, window_bounds = array<i64: 32, 768>}, {pipeline_mode = #tpu.pipeline_mode<synchronous>, transform_indices = @transform_1, window_bounds = array<i64: 272, 128>}, {transform_indices = @transform_2, window_bounds = array<i64: 32, 256>}]} {
    %c0 = arith.constant 0 : index
    %c0_0 = arith.constant 0 : index
    %0 = vector.load %arg2[%c0, %c0_0] : memref<272x128xf32, #tpu.memory_space<vmem>>, vector<256x128xf32>
    %c256 = arith.constant 256 : index
    %c0_1 = arith.constant 0 : index
    %1 = vector.load %arg2[%c256, %c0_1] : memref<272x128xf32, #tpu.memory_space<vmem>>, vector<1x128xf32>
    %c264 = arith.constant 264 : index
    %c0_2 = arith.constant 0 : index
    %2 = vector.load %arg2[%c264, %c0_2] : memref<272x128xf32, #tpu.memory_space<vmem>>, vector<1x128xf32>
    %c0_3 = arith.constant 0 : index
    %c0_4 = arith.constant 0 : index
    %3 = vector.load %arg1[%c0_3, %c0_4] : memref<32x768xf32, #tpu.memory_space<vmem>>, vector<32x256xf32>
    %cst = arith.constant 0.000000e+00 : f32
    %4 = vector.broadcast %cst : f32 to vector<32x256xf32>
    %5 = arith.cmpf ogt, %3, %4 : vector<32x256xf32>
    %cst_5 = arith.constant 0.000000e+00 : f32
    %6 = vector.broadcast %cst_5 : f32 to vector<32x256xf32>
    %7 = arith.minimumf %3, %6 : vector<32x256xf32>
    %8 = math.exp %7 : vector<32x256xf32>
    %cst_6 = arith.constant 1.000000e+00 : f32
    %9 = vector.broadcast %cst_6 : f32 to vector<32x256xf32>
    %10 = arith.subf %8, %9 : vector<32x256xf32>
    %11 = arith.select %5, %3, %10 : vector<32x256xi1>, vector<32x256xf32>
    %c0_7 = arith.constant 0 : index
    %c256_8 = arith.constant 256 : index
    %12 = vector.load %arg1[%c0_7, %c256_8] : memref<32x768xf32, #tpu.memory_space<vmem>>, vector<32x256xf32>
    %cst_9 = arith.constant 0.000000e+00 : f32
    %13 = vector.broadcast %cst_9 : f32 to vector<32x256xf32>
    %14 = arith.cmpf ogt, %12, %13 : vector<32x256xf32>
    %cst_10 = arith.constant 0.000000e+00 : f32
    %15 = vector.broadcast %cst_10 : f32 to vector<32x256xf32>
    %16 = arith.minimumf %12, %15 : vector<32x256xf32>
    %17 = math.exp %16 : vector<32x256xf32>
    %cst_11 = arith.constant 1.000000e+00 : f32
    %18 = vector.broadcast %cst_11 : f32 to vector<32x256xf32>
    %19 = arith.subf %17, %18 : vector<32x256xf32>
    %20 = arith.select %14, %12, %19 : vector<32x256xi1>, vector<32x256xf32>
    %c0_12 = arith.constant 0 : index
    %c512 = arith.constant 512 : index
    %21 = vector.load %arg1[%c0_12, %c512] : memref<32x768xf32, #tpu.memory_space<vmem>>, vector<32x256xf32>
    %cst_13 = arith.constant 0.000000e+00 : f32
    %22 = vector.broadcast %cst_13 : f32 to vector<32x256xf32>
    %23 = arith.cmpf ogt, %21, %22 : vector<32x256xf32>
    %cst_14 = arith.constant 0.000000e+00 : f32
    %24 = vector.broadcast %cst_14 : f32 to vector<32x256xf32>
    %25 = arith.minimumf %21, %24 : vector<32x256xf32>
    %26 = math.exp %25 : vector<32x256xf32>
    %cst_15 = arith.constant 1.000000e+00 : f32
    %27 = vector.broadcast %cst_15 : f32 to vector<32x256xf32>
    %28 = arith.subf %26, %27 : vector<32x256xf32>
    %29 = arith.select %23, %21, %28 : vector<32x256xi1>, vector<32x256xf32>
    %cst_16 = arith.constant dense<0.000000e+00> : vector<32x128xf32>
    %30 = tpu.matmul %11, %0, %cst_16 {dimension_numbers = #tpu.dot_dimension_numbers<[1], [0], [0], [1], [0, 0, 1, 1], [], []>} : vector<32x256xf32>, vector<256x128xf32>, vector<32x128xf32> -> vector<32x128xf32>
    %31 = vector.broadcast %1 : vector<1x128xf32> to vector<32x128xf32>
    %32 = arith.addf %30, %31 : vector<32x128xf32>
    %33 = math.tanh %32 : vector<32x128xf32>
    %34 = vector.broadcast %2 : vector<1x128xf32> to vector<32x128xf32>
    %35 = arith.mulf %33, %34 : vector<32x128xf32>
    %cst_17 = arith.constant dense<0.000000e+00> : vector<32xf32>
    %36 = vector.multi_reduction <add>, %35, %cst_17 [1] : vector<32x128xf32> to vector<32xf32>
    %37 = vector.shape_cast %36 : vector<32xf32> to vector<32x1xf32>
    %cst_18 = arith.constant dense<0.000000e+00> : vector<32x128xf32>
    %38 = tpu.matmul %20, %0, %cst_18 {dimension_numbers = #tpu.dot_dimension_numbers<[1], [0], [0], [1], [0, 0, 1, 1], [], []>} : vector<32x256xf32>, vector<256x128xf32>, vector<32x128xf32> -> vector<32x128xf32>
    %39 = vector.broadcast %1 : vector<1x128xf32> to vector<32x128xf32>
    %40 = arith.addf %38, %39 : vector<32x128xf32>
    %41 = math.tanh %40 : vector<32x128xf32>
    %42 = vector.broadcast %2 : vector<1x128xf32> to vector<32x128xf32>
    %43 = arith.mulf %41, %42 : vector<32x128xf32>
    %cst_19 = arith.constant dense<0.000000e+00> : vector<32xf32>
    %44 = vector.multi_reduction <add>, %43, %cst_19 [1] : vector<32x128xf32> to vector<32xf32>
    %45 = vector.shape_cast %44 : vector<32xf32> to vector<32x1xf32>
    %cst_20 = arith.constant dense<0.000000e+00> : vector<32x128xf32>
    %46 = tpu.matmul %29, %0, %cst_20 {dimension_numbers = #tpu.dot_dimension_numbers<[1], [0], [0], [1], [0, 0, 1, 1], [], []>} : vector<32x256xf32>, vector<256x128xf32>, vector<32x128xf32> -> vector<32x128xf32>
    %47 = vector.broadcast %1 : vector<1x128xf32> to vector<32x128xf32>
    %48 = arith.addf %46, %47 : vector<32x128xf32>
    %49 = math.tanh %48 : vector<32x128xf32>
    %50 = vector.broadcast %2 : vector<1x128xf32> to vector<32x128xf32>
    %51 = arith.mulf %49, %50 : vector<32x128xf32>
    %cst_21 = arith.constant dense<0.000000e+00> : vector<32xf32>
    %52 = vector.multi_reduction <add>, %51, %cst_21 [1] : vector<32x128xf32> to vector<32xf32>
    %53 = vector.shape_cast %52 : vector<32xf32> to vector<32x1xf32>
    %54 = arith.maximumf %37, %45 : vector<32x1xf32>
    %55 = arith.maximumf %54, %53 : vector<32x1xf32>
    %56 = arith.subf %37, %55 : vector<32x1xf32>
    %57 = math.exp %56 : vector<32x1xf32>
    %58 = arith.subf %45, %55 : vector<32x1xf32>
    %59 = math.exp %58 : vector<32x1xf32>
    %60 = arith.subf %53, %55 : vector<32x1xf32>
    %61 = math.exp %60 : vector<32x1xf32>
    %62 = arith.addf %57, %59 : vector<32x1xf32>
    %63 = arith.addf %62, %61 : vector<32x1xf32>
    %cst_22 = arith.constant 1.000000e+00 : f32
    %64 = vector.broadcast %cst_22 : f32 to vector<32x1xf32>
    %65 = arith.divf %64, %63 : vector<32x1xf32>
    %66 = arith.mulf %57, %65 : vector<32x1xf32>
    %67 = vector.broadcast %66 : vector<32x1xf32> to vector<32x256xf32>
    %68 = arith.mulf %11, %67 : vector<32x256xf32>
    %69 = arith.mulf %59, %65 : vector<32x1xf32>
    %70 = vector.broadcast %69 : vector<32x1xf32> to vector<32x256xf32>
    %71 = arith.mulf %20, %70 : vector<32x256xf32>
    %72 = arith.addf %68, %71 : vector<32x256xf32>
    %73 = arith.mulf %61, %65 : vector<32x1xf32>
    %74 = vector.broadcast %73 : vector<32x1xf32> to vector<32x256xf32>
    %75 = arith.mulf %29, %74 : vector<32x256xf32>
    %76 = arith.addf %72, %75 : vector<32x256xf32>
    %c0_23 = arith.constant 0 : index
    %c0_24 = arith.constant 0 : index
    %77 = vector.load %arg3[%c0_23, %c0_24] : memref<32x256xf32, #tpu.memory_space<vmem>>, vector<32x256xf32>
    tpu.vector_store %arg3[%c0_23, %c0_24], %76 {strides = array<i32>} : memref<32x256xf32, #tpu.memory_space<vmem>>, vector<32x256xf32>,
    return
  }
  func.func @transform_0(%arg0: i32) -> (i32, i32) {
    %c0_i32 = arith.constant 0 : i32
    %c0_i32_0 = arith.constant 0 : i32
    return %arg0, %c0_i32 : i32, i32
  }
  func.func @transform_1(%arg0: i32) -> (i32, i32) {
    %c0_i32 = arith.constant 0 : i32
    %c0_i32_0 = arith.constant 0 : i32
    %c0_i32_1 = arith.constant 0 : i32
    return %c0_i32, %c0_i32_0 : i32, i32
  }
  func.func @transform_2(%arg0: i32) -> (i32, i32) {
    %c0_i32 = arith.constant 0 : i32
    %c0_i32_0 = arith.constant 0 : i32
    return %arg0, %c0_i32 : i32, i32
  }
}

</mosaic_0001>

<llo_original>
// kernel: tpu_custom_call.1
$region0: #{tpu_custom_call.1}
  #allocation0 [shape = 'u32[]', space=smem, size = 0x4, offset = 0x4, fixed_abs, tag = 'smem constant byte address 0x4 - core index']
  #allocation1 [shape = 'u32[144,128]{1,0:T(1,128)}', space=vmem, size = 0x12000, scoped, tag = 'internal scratch']
  %s0 = inlined_call_operand.hbm [shape: f32[64,768], index: 0, kind: input, shape index: {}]
  %s1 = inlined_call_operand.hbm [shape: f32[272,128], index: 1, kind: input, shape index: {}]
  %s2 = inlined_call_operand.hbm [shape: f32[64,256], index: 2, kind: output, shape index: {}]
  %s3 = sld [smem:[#allocation0]]
  $region49: #{tpu_custom_call.1} parent=0
    _
  %s5 = ssub.s32 1, %s3
  %s6 = scalar_select 0, %s5, %s3
  $region1: #{tpu_custom_call.1} parent=0
    #allocation2 [shape = 'u8[196608]{0}', space=vmem, size = 0x30000, scoped, tag = 'input window, operand 0']
    #allocation3 [shape = 's32[2]{0}', space=sflag, size = 0x8, scoped, tag = 'scoped memory for tpu_custom_call.1']
    #allocation4 [shape = 's32[2]{0}', space=sflag, size = 0x8, scoped, tag = 'scoped memory for tpu_custom_call.1']
    #allocation5 [shape = 'u8[139264]{0}', space=vmem, size = 0x22000, scoped, tag = 'input window, operand 1, single buffered']
    #allocation6 [shape = 's32[1]{0}', space=sflag, size = 0x4, scoped, tag = 'scoped memory for tpu_custom_call.1']
    #allocation7 [shape = 'u8[65536]{0}', space=vmem, size = 0x10000, scoped, tag = 'output window, operand 0']
    %7 = vsyncpa [#allocation3], 0
    %s8 = scalar_lea.sflag [#allocation3], 1
    %9 = vsyncpa %s8, 0
    %10 = vsyncpa [#allocation6], 0
    %11 = vsyncpa [#allocation4], 0
    %s12 = scalar_lea.sflag [#allocation4], 1
    %13 = vsyncpa %s12, 0
    loop: start=0, step=1, limit=4
    $region2: #{tpu_custom_call.1} parent=1 // loop_pre_header
      _
    $region3: #{tpu_custom_call.1} parent=1 // loop_header
      %s15 = sphi 0, %s19
      %p16 = scmp.ge.s32.totalorder %s15, 4
      %s25 = sphi 0, %s27
      %s28 = sphi 0, %s25
      %s29 = sphi 0, %s28
      %s45 = sphi 0, %s29
      %s49 = sphi 0, %s49
      %s51 = sphi 0, %s49
      %s52 = sphi 0, %s51
      %s66 = sphi 0, %s52
      %s72 = sphi 0, %s74
      %s75 = sphi 0, %s72
      %s76 = sphi 0, %s75
      %s92 = sphi 0, %s76
    $region4: #{tpu_custom_call.1} parent=1 // loop_header_branch
      %18 = sbr.rel (%p16) target = $region8
    $region5: #{tpu_custom_call.1} parent=1 // loop_body
      %s20 = ssub.s32 %s15, 1
      %s21 = ssub.s32 %s15, 2
      %s22 = sadd.s32 %s15, 1
      %s23 = ssub.s32 %s15, %s22
      %p24 = scmp.eq.s32.totalorder %s23, 0
      %s26 = sadd.s32 %s25, 1
      %s27 = scalar_select %p24, %s25, %s26
      %p30 = pneg %p24
      %p31 = scmp.eq.s32.totalorder %s15, 1
      %p32 = por %p30, %p31
      %p33 = scmp.ne.s32.totalorder %s25, %s28
      %p34 = scmp.eq.s32.totalorder %s15, 0
      %p35 = por %p33, %p34
      %p36 = scmp.ne.s32.totalorder %s25, %s28
      %p37 = scmp.eq.s32.totalorder %s20, 1
      %p38 = por %p36, %p37
      %p39 = scmp.ne.s32.totalorder %s28, %s29
      %p40 = scmp.eq.s32.totalorder %s20, 0
      %p41 = por %p39, %p40
      %p42 = scmp.ne.s32.totalorder %s28, %s29
      %p43 = scmp.eq.s32.totalorder %s21, 1
      %p44 = por %p42, %p43
      %p46 = scmp.ne.s32.totalorder %s29, %s45
      %p47 = scmp.eq.s32.totalorder %s21, 0
      %p48 = por %p46, %p47
      %s50 = sadd.s32 %s49, 1
      %p53 = scmp.eq.s32.totalorder %s15, 1
      %p54 = scmp.ne.s32.totalorder %s49, %s51
      %p55 = scmp.eq.s32.totalorder %s15, 0
      %p56 = por %p54, %p55
      %p57 = scmp.ne.s32.totalorder %s49, %s51
      %p58 = scmp.eq.s32.totalorder %s20, 1
      %p59 = por %p57, %p58
      %p60 = scmp.ne.s32.totalorder %s51, %s52
      %p61 = scmp.eq.s32.totalorder %s20, 0
      %p62 = por %p60, %p61
      %p63 = scmp.ne.s32.totalorder %s51, %s52
      %p64 = scmp.eq.s32.totalorder %s21, 1
      %p65 = por %p63, %p64
      %p67 = scmp.ne.s32.totalorder %s52, %s66
      %p68 = scmp.eq.s32.totalorder %s21, 0
      %p69 = por %p67, %p68
      %s70 = ssub.s32 %s15, %s22
      %p71 = scmp.eq.s32.totalorder %s70, 0
      %s73 = sadd.s32 %s72, 1
      %s74 = scalar_select %p71, %s72, %s73
      %p77 = pneg %p71
      %p78 = scmp.eq.s32.totalorder %s15, 1
      %p79 = por %p77, %p78
      %p80 = scmp.ne.s32.totalorder %s72, %s75
      %p81 = scmp.eq.s32.totalorder %s15, 0
      %p82 = por %p80, %p81
      %p83 = scmp.ne.s32.totalorder %s72, %s75
      %p84 = scmp.eq.s32.totalorder %s20, 1
      %p85 = por %p83, %p84
      %p86 = scmp.ne.s32.totalorder %s75, %s76
      %p87 = scmp.eq.s32.totalorder %s20, 0
      %p88 = por %p86, %p87
      %p89 = scmp.ne.s32.totalorder %s75, %s76
      %p90 = scmp.eq.s32.totalorder %s21, 1
      %p91 = por %p89, %p90
      %p93 = scmp.ne.s32.totalorder %s76, %s92
      %p94 = scmp.eq.s32.totalorder %s21, 0
      %p95 = por %p93, %p94
      %p96 = scmp.le.s32.totalorder 1, %s15
      %p97 = scmp.lt.s32.totalorder %s15, 3
      %p98 = pnand %p96, %p97
      %p99 = pneg %p98
      // Predicated region
      $region9: #{tpu_custom_call.1} parent=5 // pred_check
        _
      $region10: #{tpu_custom_call.1} parent=5 // pred_check_branch
        %101 = sbr.rel (%p98) target = $region12
      $region11: #{tpu_custom_call.1} parent=5 // pred_region
        %s102 = ssub.s32 %s15, 1
        // Predicated region
        $region13: #{tpu_custom_call.1} parent=11 // pred_check
          %p103 = pneg %p62
        $region14: #{tpu_custom_call.1} parent=11 // pred_check_branch
          %105 = sbr.rel (%p103) target = $region16
        $region15: #{tpu_custom_call.1} parent=11 // pred_region
          %s107 = ssub.s32 4352, 4352
          %108 = vsyncadd [#allocation6], %s107
          %s109 = sshll.u32 [#allocation5], 4
          %s110 = int_to_ptr.vmem [resolvable:$true] %s109
          %115 = dma.hbm_to_vmem [thread:$0]  %s1, 4352, %s110, [#allocation6], 128, 128, 8
        $region16: #{tpu_custom_call.1} parent=11 // pred_fallthru
          _
      $region12: #{tpu_custom_call.1} parent=5 // pred_fallthru
        _
      %p116 = scmp.lt.s32.totalorder %s15, 2
      // Predicated region
      $region17: #{tpu_custom_call.1} parent=5 // pred_check
        %p117 = pneg %p116
      $region18: #{tpu_custom_call.1} parent=5 // pred_check_branch
        %119 = sbr.rel (%p117) target = $region20
      $region19: #{tpu_custom_call.1} parent=5 // pred_region
        // Predicated region
        $region21: #{tpu_custom_call.1} parent=19 // pred_check
          %p120 = pneg %p35
        $region22: #{tpu_custom_call.1} parent=19 // pred_check_branch
          %122 = sbr.rel (%p120) target = $region24
        $region23: #{tpu_custom_call.1} parent=19 // pred_region
          %s123 = sand.u32 %s25, 1
          %s124 = scalar_lea.sflag [#allocation3], %s123
          %s125 = sand.u32 %s25, 1
          %s126 = smul.addr %s125, 192
          %s127 = scalar_lea.vmem [#allocation2], %s126
          %s128 = smul.u32 4, %s15
          %s130 = ssub.s32 3072, 3072
          %131 = vsyncadd %s124, %s130
          %s132 = smul.addr %s128, 6
          %s133 = smul.addr %s132, 128
          %s134 = scalar_lea.hbm %s0, %s133
          %s135 = sshll.u32 %s127, 4
          %s136 = int_to_ptr.vmem [resolvable:$true] %s135
          %141 = dma.hbm_to_vmem [thread:$0]  %s134, 3072, %s136, %s124, 768, 768, 48
        $region24: #{tpu_custom_call.1} parent=19 // pred_fallthru
          _
      $region20: #{tpu_custom_call.1} parent=5 // pred_fallthru
        _
      %p142 = scmp.le.s32.totalorder 1, %s15
      %p143 = scmp.lt.s32.totalorder %s15, 3
      %p144 = pnand %p142, %p143
      %p145 = pneg %p144
      // Predicated region
      $region25: #{tpu_custom_call.1} parent=5 // pred_check
        _
      $region26: #{tpu_custom_call.1} parent=5 // pred_check_branch
        %147 = sbr.rel (%p144) target = $region28
      $region27: #{tpu_custom_call.1} parent=5 // pred_region
        %s148 = ssub.s32 %s15, 1
        %s149 = sand.u32 %s28, 1
        %s150 = scalar_lea.sflag [#allocation3], %s149
        %s151 = sand.u32 %s28, 1
        %s152 = smul.addr %s151, 192
        %s153 = scalar_lea.vmem [#allocation2], %s152
        // Predicated region
        $region29: #{tpu_custom_call.1} parent=27 // pred_check
          %p154 = pneg %p41
        $region30: #{tpu_custom_call.1} parent=27 // pred_check_branch
          %156 = sbr.rel (%p154) target = $region32
        $region31: #{tpu_custom_call.1} parent=27 // pred_region
          %157 = dma.done %s150, 3072
        $region32: #{tpu_custom_call.1} parent=27 // pred_fallthru
          _
        // Predicated region
        $region33: #{tpu_custom_call.1} parent=27 // pred_check
          %p158 = pneg %p62
        $region34: #{tpu_custom_call.1} parent=27 // pred_check_branch
          %160 = sbr.rel (%p158) target = $region36
        $region35: #{tpu_custom_call.1} parent=27 // pred_region
          %161 = dma.done [#allocation6], 4352
        $region36: #{tpu_custom_call.1} parent=27 // pred_fallthru
          _
        %s162 = sand.u32 %s28, 1
        %s163 = scalar_lea.sflag [#allocation3], %s162
        %s164 = sand.u32 %s28, 1
        %s165 = smul.addr %s164, 192
        %s166 = scalar_lea.vmem [#allocation2], %s165
        %p167 = pneg %p41
        %p168 = pneg %p38
        %p169 = pneg %p62
        %p170 = pneg %p59
        %p171 = pneg %p88
        %p172 = pneg %p85
        %s173 = sand.u32 %s75, 1
        %s174 = scalar_lea.sflag [#allocation4], %s173
        %s175 = sand.u32 %s75, 1
        %s176 = smul.addr %s175, 64
        %s177 = scalar_lea.vmem [#allocation7], %s176
        %s178 = smul.u32 4, %s20
        %s179 = smul.u32 4, %s20
        %v180 = vld [vmem:[#allocation5] sm:$0xff]
        %v181 = vld [vmem:[#allocation5 + $0x8] sm:$0xff]
        %v182 = vld [vmem:[#allocation5 + $0x10] sm:$0xff]
        %v183 = vld [vmem:[#allocation5 + $0x18] sm:$0xff]
        %v184 = vld [vmem:[#allocation5 + $0x20] sm:$0xff]
        %v185 = vld [vmem:[#allocation5 + $0x28] sm:$0xff]
        %v186 = vld [vmem:[#allocation5 + $0x30] sm:$0xff]
        %v187 = vld [vmem:[#allocation5 + $0x38] sm:$0xff]
        %v188 = vld [vmem:[#allocation5 + $0x40] sm:$0xff]
        %v189 = vld [vmem:[#allocation5 + $0x48] sm:$0xff]
        %v190 = vld [vmem:[#allocation5 + $0x50] sm:$0xff]
        %v191 = vld [vmem:[#allocation5 + $0x58] sm:$0xff]
        %v192 = vld [vmem:[#allocation5 + $0x60] sm:$0xff]
        %v193 = vld [vmem:[#allocation5 + $0x68] sm:$0xff]
        %v194 = vld [vmem:[#allocation5 + $0x70] sm:$0xff]
        %v195 = vld [vmem:[#allocation5 + $0x78] sm:$0xff]
        %v196 = vld [vmem:[#allocation5 + $0x80] sm:$0xff]
        %v197 = vld [vmem:[#allocation5 + $0x88] sm:$0xff]
        %v198 = vld [vmem:[#allocation5 + $0x90] sm:$0xff]
        %v199 = vld [vmem:[#allocation5 + $0x98] sm:$0xff]
        %v200 = vld [vmem:[#allocation5 + $0xa0] sm:$0xff]
        %v201 = vld [vmem:[#allocation5 + $0xa8] sm:$0xff]
        %v202 = vld [vmem:[#allocation5 + $0xb0] sm:$0xff]
        %v203 = vld [vmem:[#allocation5 + $0xb8] sm:$0xff]
        %v204 = vld [vmem:[#allocation5 + $0xc0] sm:$0xff]
        %v205 = vld [vmem:[#allocation5 + $0xc8] sm:$0xff]
        %v206 = vld [vmem:[#allocation5 + $0xd0] sm:$0xff]
        %v207 = vld [vmem:[#allocation5 + $0xd8] sm:$0xff]
        %v208 = vld [vmem:[#allocation5 + $0xe0] sm:$0xff]
        %v209 = vld [vmem:[#allocation5 + $0xe8] sm:$0xff]
        %v210 = vld [vmem:[#allocation5 + $0xf0] sm:$0xff]
        %v211 = vld [vmem:[#allocation5 + $0xf8] sm:$0xff]
        %v212 = vld [vmem:[#allocation5 + $0x100] sm:$0x1]
        %v213 = vld [vmem:[#allocation5 + $0x108] sm:$0x1]
        %v214 = vld [vmem:[%s153] sm:$0xff]
        %v215 = vld [vmem:[%s153 + $0x8] sm:$0xff]
        %v216 = vld [vmem:[%s153 + $0x30] sm:$0xff]
        %v217 = vld [vmem:[%s153 + $0x38] sm:$0xff]
        %v218 = vld [vmem:[%s153 + $0x60] sm:$0xff]
        %v219 = vld [vmem:[%s153 + $0x68] sm:$0xff]
        %v220 = vld [vmem:[%s153 + $0x90] sm:$0xff]
        %v221 = vld [vmem:[%s153 + $0x98] sm:$0xff]
        %vm222 = vcmp.gt.f32.partialorder %v214, 0.0
        %vm223 = vcmp.gt.f32.partialorder %v215, 0.0
        %vm224 = vcmp.gt.f32.partialorder %v216, 0.0
        %vm225 = vcmp.gt.f32.partialorder %v217, 0.0
        %vm226 = vcmp.gt.f32.partialorder %v218, 0.0
        %vm227 = vcmp.gt.f32.partialorder %v219, 0.0
        %vm228 = vcmp.gt.f32.partialorder %v220, 0.0
        %vm229 = vcmp.gt.f32.partialorder %v221, 0.0
        %v230 = vmin.f32 %v214, 0.0
        %v231 = vmin.f32 %v215, 0.0
        %v232 = vmin.f32 %v216, 0.0
        %v233 = vmin.f32 %v217, 0.0
        %v234 = vmin.f32 %v218, 0.0
        %v235 = vmin.f32 %v219, 0.0
        %v236 = vmin.f32 %v220, 0.0
        %v237 = vmin.f32 %v221, 0.0
        %v238 = vmul.f32 %v230, 1.442695
        %v239 = vpow.pop %v238
        %v240 = vmul.f32 %v231, 1.442695
        %v241 = vpow.pop %v240
        %v242 = vmul.f32 %v232, 1.442695
        %v243 = vpow.pop %v242
        %v244 = vmul.f32 %v233, 1.442695
        %v245 = vpow.pop %v244
        %v246 = vmul.f32 %v234, 1.442695
        %v247 = vpow.pop %v246
        %v248 = vmul.f32 %v235, 1.442695
        %v249 = vpow.pop %v248
        %v250 = vmul.f32 %v236, 1.442695
        %v251 = vpow.pop %v250
        %v252 = vmul.f32 %v237, 1.442695
        %v253 = vpow.pop %v252
        %v254 = vsub.f32 %v239, 1.0
        %v255 = vsub.f32 %v241, 1.0
        %v256 = vsub.f32 %v243, 1.0
        %v257 = vsub.f32 %v245, 1.0
        %v258 = vsub.f32 %v247, 1.0
        %v259 = vsub.f32 %v249, 1.0
        %v260 = vsub.f32 %v251, 1.0
        %v261 = vsub.f32 %v253, 1.0
        %v262 = vsel %vm222, %v214, %v254
        %v263 = vsel %vm223, %v215, %v255
        %v264 = vsel %vm224, %v216, %v256
        %v265 = vsel %vm225, %v217, %v257
        %v266 = vsel %vm226, %v218, %v258
        %v267 = vsel %vm227, %v219, %v259
        %v268 = vsel %vm228, %v220, %v260
        %v269 = vsel %vm229, %v221, %v261
        %v270 = vld [vmem:[%s153 + $0x10] sm:$0xff]
        %v271 = vld [vmem:[%s153 + $0x18] sm:$0xff]
        %v272 = vld [vmem:[%s153 + $0x40] sm:$0xff]
        %v273 = vld [vmem:[%s153 + $0x48] sm:$0xff]
        %v274 = vld [vmem:[%s153 + $0x70] sm:$0xff]
        %v275 = vld [vmem:[%s153 + $0x78] sm:$0xff]
        %v276 = vld [vmem:[%s153 + $0xa0] sm:$0xff]
        %v277 = vld [vmem:[%s153 + $0xa8] sm:$0xff]
        %vm278 = vcmp.gt.f32.partialorder %v270, 0.0
        %vm279 = vcmp.gt.f32.partialorder %v271, 0.0
        %vm280 = vcmp.gt.f32.partialorder %v272, 0.0
        %vm281 = vcmp.gt.f32.partialorder %v273, 0.0
        %vm282 = vcmp.gt.f32.partialorder %v274, 0.0
        %vm283 = vcmp.gt.f32.partialorder %v275, 0.0
        %vm284 = vcmp.gt.f32.partialorder %v276, 0.0
        %vm285 = vcmp.gt.f32.partialorder %v277, 0.0
        %v286 = vmin.f32 %v270, 0.0
        %v287 = vmin.f32 %v271, 0.0
        %v288 = vmin.f32 %v272, 0.0
        %v289 = vmin.f32 %v273, 0.0
        %v290 = vmin.f32 %v274, 0.0
        %v291 = vmin.f32 %v275, 0.0
        %v292 = vmin.f32 %v276, 0.0
        %v293 = vmin.f32 %v277, 0.0
        %v294 = vmul.f32 %v286, 1.442695
        %v295 = vpow.pop %v294
        %v296 = vmul.f32 %v287, 1.442695
        %v297 = vpow.pop %v296
        %v298 = vmul.f32 %v288, 1.442695
        %v299 = vpow.pop %v298
        %v300 = vmul.f32 %v289, 1.442695
        %v301 = vpow.pop %v300
        %v302 = vmul.f32 %v290, 1.442695
        %v303 = vpow.pop %v302
        %v304 = vmul.f32 %v291, 1.442695
        %v305 = vpow.pop %v304
        %v306 = vmul.f32 %v292, 1.442695
        %v307 = vpow.pop %v306
        %v308 = vmul.f32 %v293, 1.442695
        %v309 = vpow.pop %v308
        %v310 = vsub.f32 %v295, 1.0
        %v311 = vsub.f32 %v297, 1.0
        %v312 = vsub.f32 %v299, 1.0
        %v313 = vsub.f32 %v301, 1.0
        %v314 = vsub.f32 %v303, 1.0
        %v315 = vsub.f32 %v305, 1.0
        %v316 = vsub.f32 %v307, 1.0
        %v317 = vsub.f32 %v309, 1.0
        %v318 = vsel %vm278, %v270, %v310
        %v319 = vsel %vm279, %v271, %v311
        %v320 = vsel %vm280, %v272, %v312
        %v321 = vsel %vm281, %v273, %v313
        %v322 = vsel %vm282, %v274, %v314
        %v323 = vsel %vm283, %v275, %v315
        %v324 = vsel %vm284, %v276, %v316
        %v325 = vsel %vm285, %v277, %v317
        %v326 = vld [vmem:[%s153 + $0x20] sm:$0xff]
        %v327 = vld [vmem:[%s153 + $0x28] sm:$0xff]
        %v328 = vld [vmem:[%s153 + $0x50] sm:$0xff]
        %v329 = vld [vmem:[%s153 + $0x58] sm:$0xff]
        %v330 = vld [vmem:[%s153 + $0x80] sm:$0xff]
        %v331 = vld [vmem:[%s153 + $0x88] sm:$0xff]
        %v332 = vld [vmem:[%s153 + $0xb0] sm:$0xff]
        %v333 = vld [vmem:[%s153 + $0xb8] sm:$0xff]
        %vm334 = vcmp.gt.f32.partialorder %v326, 0.0
        %vm335 = vcmp.gt.f32.partialorder %v327, 0.0
        %vm336 = vcmp.gt.f32.partialorder %v328, 0.0
        %vm337 = vcmp.gt.f32.partialorder %v329, 0.0
        %vm338 = vcmp.gt.f32.partialorder %v330, 0.0
        %vm339 = vcmp.gt.f32.partialorder %v331, 0.0
        %vm340 = vcmp.gt.f32.partialorder %v332, 0.0
        %vm341 = vcmp.gt.f32.partialorder %v333, 0.0
        %v342 = vmin.f32 %v326, 0.0
        %v343 = vmin.f32 %v327, 0.0
        %v344 = vmin.f32 %v328, 0.0
        %v345 = vmin.f32 %v329, 0.0
        %v346 = vmin.f32 %v330, 0.0
        %v347 = vmin.f32 %v331, 0.0
        %v348 = vmin.f32 %v332, 0.0
        %v349 = vmin.f32 %v333, 0.0
        %v350 = vmul.f32 %v342, 1.442695
        %v351 = vpow.pop %v350
        %v352 = vmul.f32 %v343, 1.442695
        %v353 = vpow.pop %v352
        %v354 = vmul.f32 %v344, 1.442695
        %v355 = vpow.pop %v354
        %v356 = vmul.f32 %v345, 1.442695
        %v357 = vpow.pop %v356
        %v358 = vmul.f32 %v346, 1.442695
        %v359 = vpow.pop %v358
        %v360 = vmul.f32 %v347, 1.442695
        %v361 = vpow.pop %v360
        %v362 = vmul.f32 %v348, 1.442695
        %v363 = vpow.pop %v362
        %v364 = vmul.f32 %v349, 1.442695
        %v365 = vpow.pop %v364
        %v366 = vsub.f32 %v351, 1.0
        %v367 = vsub.f32 %v353, 1.0
        %v368 = vsub.f32 %v355, 1.0
        %v369 = vsub.f32 %v357, 1.0
        %v370 = vsub.f32 %v359, 1.0
        %v371 = vsub.f32 %v361, 1.0
        %v372 = vsub.f32 %v363, 1.0
        %v373 = vsub.f32 %v365, 1.0
        %v374 = vsel %vm334, %v326, %v366
        %v375 = vsel %vm335, %v327, %v367
        %v376 = vsel %vm336, %v328, %v368
        %v377 = vsel %vm337, %v329, %v369
        %v378 = vsel %vm338, %v330, %v370
        %v379 = vsel %vm339, %v331, %v371
        %v380 = vsel %vm340, %v332, %v372
        %v381 = vsel %vm341, %v333, %v373
        %v382 = vlaneseq
        %v383 = vshrl.u32 %v382, 7
        %v384 = vsub.s32 0, %v383
        %v385 = vrot.slane %v212, %v384
        %386 = vmatprep.subr.mxu0 0.0
        %387 = vmatpush1.msra.mxu0 %v180
        %388 = vmatprep.subr.mxu0 0.0
        %389 = vmatpush1.msra.mxu0 %v181
        %390 = vmatprep.subr.mxu0 0.0
        %391 = vmatpush1.msra.mxu0 %v182
        %392 = vmatprep.subr.mxu0 0.0
        %393 = vmatpush1.msra.mxu0 %v183
        %394 = vmatprep.subr.mxu0 0.0
        %395 = vmatpush1.msra.mxu0 %v184
        %396 = vmatprep.subr.mxu0 0.0
        %397 = vmatpush1.msra.mxu0 %v185
        %398 = vmatprep.subr.mxu0 0.0
        %399 = vmatpush1.msra.mxu0 %v186
        %400 = vmatprep.subr.mxu0 0.0
        %401 = vmatpush1.msra.mxu0 %v187
        %402 = vmatprep.subr.mxu0 0.0
        %403 = vmatpush1.msra.mxu0 %v188
        %404 = vmatprep.subr.mxu0 0.0
        %405 = vmatpush1.msra.mxu0 %v189
        %406 = vmatprep.subr.mxu0 0.0
        %407 = vmatpush1.msra.mxu0 %v190
        %408 = vmatprep.subr.mxu0 0.0
        %409 = vmatpush1.msra.mxu0 %v191
        %410 = vmatprep.subr.mxu0 0.0
        %411 = vmatpush1.msra.mxu0 %v192
        %412 = vmatprep.subr.mxu0 0.0
        %413 = vmatpush1.msra.mxu0 %v193
        %414 = vmatprep.subr.mxu0 0.0
        %415 = vmatpush1.msra.mxu0 %v194
        %416 = vmatprep.subr.mxu0 0.0
        %417 = vmatpush1.msra.mxu0 %v195
        %418 = vmatprep.subr.mxu0 0.0
        %419 = vmatpush1.msra.mxu0 %v196
        %420 = vmatprep.subr.mxu0 0.0
        %421 = vmatpush1.msra.mxu0 %v197
        %422 = vmatprep.subr.mxu0 0.0
        %423 = vmatpush1.msra.mxu0 %v198
        %424 = vmatprep.subr.mxu0 0.0
        %425 = vmatpush1.msra.mxu0 %v199
        %426 = vmatprep.subr.mxu0 0.0
        %427 = vmatpush1.msra.mxu0 %v200
        %428 = vmatprep.subr.mxu0 0.0
        %429 = vmatpush1.msra.mxu0 %v201
        %430 = vmatprep.subr.mxu0 0.0
        %431 = vmatpush1.msra.mxu0 %v202
        %432 = vmatprep.subr.mxu0 0.0
        %433 = vmatpush1.msra.mxu0 %v203
        %434 = vmatprep.subr.mxu0 0.0
        %435 = vmatpush1.msra.mxu0 %v204
        %436 = vmatprep.subr.mxu0 0.0
        %437 = vmatpush1.msra.mxu0 %v205
        %438 = vmatprep.subr.mxu0 0.0
        %439 = vmatpush1.msra.mxu0 %v206
        %440 = vmatprep.subr.mxu0 0.0
        %441 = vmatpush1.msra.mxu0 %v207
        %442 = vmatprep.subr.mxu0 0.0
        %443 = vmatpush1.msra.mxu0 %v208
        %444 = vmatprep.subr.mxu0 0.0
        %445 = vmatpush1.msra.mxu0 %v209
        %446 = vmatprep.subr.mxu0 0.0
        %447 = vmatpush1.msra.mxu0 %v210
        %448 = vmatprep.subr.mxu0 0.0
        %449 = vmatpush1.msra.mxu0 %v211
        %450 = vmatprep.mubr.f32.mxu0 %v263
        %451 = vmatmul.mubr.f32.gmra.mrb[0].mxu0 %v262
        %v452 = vpop.f32.mrb[0].mxu0
        %v453 = vadd.f32 %v385, %v452
        %v454 = vpop.f32.mrb[0].mxu0
        %455 = vmatprep.mubr.f32.mxu0 %v265
        %456 = vmatmul.mubr.f32.gmra.mrb[0].mxu0 %v264
        %v457 = vpop.f32.mrb[0].mxu0
        %v458 = vadd.f32 %v385, %v457
        %v459 = vpop.f32.mrb[0].mxu0
        %460 = vmatprep.mubr.f32.mxu0 %v267
        %461 = vmatmul.mubr.f32.gmra.mrb[0].mxu0 %v266
        %v462 = vpop.f32.mrb[0].mxu0
        %v463 = vadd.f32 %v385, %v462
        %v464 = vpop.f32.mrb[0].mxu0
        %465 = vmatprep.mubr.f32.mxu0 %v269
        %466 = vmatmul.mubr.f32.gmra.mrb[0].mxu0 %v268
        %v467 = vpop.f32.mrb[0].mxu0
        %v468 = vadd.f32 %v385, %v467
        %v469 = vpop.f32.mrb[0].mxu0
        %470 = vdwg.mxu0
        %v471 = vtanh.pop %v453
        %v472 = vtanh.pop %v458
        %v473 = vtanh.pop %v463
        %v474 = vtanh.pop %v468
        %v475 = vlaneseq
        %v476 = vshrl.u32 %v475, 7
        %v477 = vsub.s32 0, %v476
        %v478 = vrot.slane %v213, %v477
        %v479 = vmul.f32 %v471, %v478
        %v480 = vmul.f32 %v472, %v478
        %v481 = vmul.f32 %v473, %v478
        %v482 = vmul.f32 %v474, %v478
        %483 = vadd.xlane.f32.xlu0 %v479
        %v484 = vpop.xlane.xlu0 %483
        %485 = vadd.xlane.f32.xlu0 %v480
        %v486 = vpop.xlane.xlu0 %485
        %487 = vadd.xlane.f32.xlu0 %v481
        %v488 = vpop.xlane.xlu0 %487
        %489 = vadd.xlane.f32.xlu0 %v482
        %v490 = vpop.xlane.xlu0 %489
        %491 = vmatprep.subr.mxu0 0.0
        %492 = vmatpush1.msra.mxu0 %v180
        %493 = vmatprep.subr.mxu0 0.0
        %494 = vmatpush1.msra.mxu0 %v181
        %495 = vmatprep.subr.mxu0 0.0
        %496 = vmatpush1.msra.mxu0 %v182
        %497 = vmatprep.subr.mxu0 0.0
        %498 = vmatpush1.msra.mxu0 %v183
        %499 = vmatprep.subr.mxu0 0.0
        %500 = vmatpush1.msra.mxu0 %v184
        %501 = vmatprep.subr.mxu0 0.0
        %502 = vmatpush1.msra.mxu0 %v185
        %503 = vmatprep.subr.mxu0 0.0
        %504 = vmatpush1.msra.mxu0 %v186
        %505 = vmatprep.subr.mxu0 0.0
        %506 = vmatpush1.msra.mxu0 %v187
        %507 = vmatprep.subr.mxu0 0.0
        %508 = vmatpush1.msra.mxu0 %v188
        %509 = vmatprep.subr.mxu0 0.0
        %510 = vmatpush1.msra.mxu0 %v189
        %511 = vmatprep.subr.mxu0 0.0
        %512 = vmatpush1.msra.mxu0 %v190
        %513 = vmatprep.subr.mxu0 0.0
        %514 = vmatpush1.msra.mxu0 %v191
        %515 = vmatprep.subr.mxu0 0.0
        %516 = vmatpush1.msra.mxu0 %v192
        %517 = vmatprep.subr.mxu0 0.0
        %518 = vmatpush1.msra.mxu0 %v193
        %519 = vmatprep.subr.mxu0 0.0
        %520 = vmatpush1.msra.mxu0 %v194
        %521 = vmatprep.subr.mxu0 0.0
        %522 = vmatpush1.msra.mxu0 %v195
        %523 = vmatprep.subr.mxu0 0.0
        %524 = vmatpush1.msra.mxu0 %v196
        %525 = vmatprep.subr.mxu0 0.0
        %526 = vmatpush1.msra.mxu0 %v197
        %527 = vmatprep.subr.mxu0 0.0
        %528 = vmatpush1.msra.mxu0 %v198
        %529 = vmatprep.subr.mxu0 0.0
        %530 = vmatpush1.msra.mxu0 %v199
        %531 = vmatprep.subr.mxu0 0.0
        %532 = vmatpush1.msra.mxu0 %v200
        %533 = vmatprep.subr.mxu0 0.0
        %534 = vmatpush1.msra.mxu0 %v201
        %535 = vmatprep.subr.mxu0 0.0
        %536 = vmatpush1.msra.mxu0 %v202
        %537 = vmatprep.subr.mxu0 0.0
        %538 = vmatpush1.msra.mxu0 %v203
        %539 = vmatprep.subr.mxu0 0.0
        %540 = vmatpush1.msra.mxu0 %v204
        %541 = vmatprep.subr.mxu0 0.0
        %542 = vmatpush1.msra.mxu0 %v205
        %543 = vmatprep.subr.mxu0 0.0
        %544 = vmatpush1.msra.mxu0 %v206
        %545 = vmatprep.subr.mxu0 0.0
        %546 = vmatpush1.msra.mxu0 %v207
        %547 = vmatprep.subr.mxu0 0.0
        %548 = vmatpush1.msra.mxu0 %v208
        %549 = vmatprep.subr.mxu0 0.0
        %550 = vmatpush1.msra.mxu0 %v209
        %551 = vmatprep.subr.mxu0 0.0
        %552 = vmatpush1.msra.mxu0 %v210
        %553 = vmatprep.subr.mxu0 0.0
        %554 = vmatpush1.msra.mxu0 %v211
        %555 = vmatprep.mubr.f32.mxu0 %v319
        %556 = vmatmul.mubr.f32.gmra.mrb[0].mxu0 %v318
        %v557 = vpop.f32.mrb[0].mxu0
        %v558 = vadd.f32 %v385, %v557
        %v559 = vpop.f32.mrb[0].mxu0
        %560 = vmatprep.mubr.f32.mxu0 %v321
        %561 = vmatmul.mubr.f32.gmra.mrb[0].mxu0 %v320
        %v562 = vpop.f32.mrb[0].mxu0
        %v563 = vadd.f32 %v385, %v562
        %v564 = vpop.f32.mrb[0].mxu0
        %565 = vmatprep.mubr.f32.mxu0 %v323
        %566 = vmatmul.mubr.f32.gmra.mrb[0].mxu0 %v322
        %v567 = vpop.f32.mrb[0].mxu0
        %v568 = vadd.f32 %v385, %v567
        %v569 = vpop.f32.mrb[0].mxu0
        %570 = vmatprep.mubr.f32.mxu0 %v325
        %571 = vmatmul.mubr.f32.gmra.mrb[0].mxu0 %v324
        %v572 = vpop.f32.mrb[0].mxu0
        %v573 = vadd.f32 %v385, %v572
        %v574 = vpop.f32.mrb[0].mxu0
        %575 = vdwg.mxu0
        %v576 = vtanh.pop %v558
        %v577 = vtanh.pop %v563
        %v578 = vtanh.pop %v568
        %v579 = vtanh.pop %v573
        %v580 = vmul.f32 %v576, %v478
        %v581 = vmul.f32 %v577, %v478
        %v582 = vmul.f32 %v578, %v478
        %v583 = vmul.f32 %v579, %v478
        %584 = vadd.xlane.f32.xlu0 %v580
        %v585 = vpop.xlane.xlu0 %584
        %586 = vadd.xlane.f32.xlu0 %v581
        %v587 = vpop.xlane.xlu0 %586
        %588 = vadd.xlane.f32.xlu0 %v582
        %v589 = vpop.xlane.xlu0 %588
        %590 = vadd.xlane.f32.xlu0 %v583
        %v591 = vpop.xlane.xlu0 %590
        %592 = vmatprep.subr.mxu0 0.0
        %593 = vmatpush1.msra.mxu0 %v180
        %594 = vmatprep.subr.mxu0 0.0
        %595 = vmatpush1.msra.mxu0 %v181
        %596 = vmatprep.subr.mxu0 0.0
        %597 = vmatpush1.msra.mxu0 %v182
        %598 = vmatprep.subr.mxu0 0.0
        %599 = vmatpush1.msra.mxu0 %v183
        %600 = vmatprep.subr.mxu0 0.0
        %601 = vmatpush1.msra.mxu0 %v184
        %602 = vmatprep.subr.mxu0 0.0
        %603 = vmatpush1.msra.mxu0 %v185
        %604 = vmatprep.subr.mxu0 0.0
        %605 = vmatpush1.msra.mxu0 %v186
        %606 = vmatprep.subr.mxu0 0.0
        %607 = vmatpush1.msra.mxu0 %v187
        %608 = vmatprep.subr.mxu0 0.0
        %609 = vmatpush1.msra.mxu0 %v188
        %610 = vmatprep.subr.mxu0 0.0
        %611 = vmatpush1.msra.mxu0 %v189
        %612 = vmatprep.subr.mxu0 0.0
        %613 = vmatpush1.msra.mxu0 %v190
        %614 = vmatprep.subr.mxu0 0.0
        %615 = vmatpush1.msra.mxu0 %v191
        %616 = vmatprep.subr.mxu0 0.0
        %617 = vmatpush1.msra.mxu0 %v192
        %618 = vmatprep.subr.mxu0 0.0
        %619 = vmatpush1.msra.mxu0 %v193
        %620 = vmatprep.subr.mxu0 0.0
        %621 = vmatpush1.msra.mxu0 %v194
        %622 = vmatprep.subr.mxu0 0.0
        %623 = vmatpush1.msra.mxu0 %v195
        %624 = vmatprep.subr.mxu0 0.0
        %625 = vmatpush1.msra.mxu0 %v196
        %626 = vmatprep.subr.mxu0 0.0
        %627 = vmatpush1.msra.mxu0 %v197
        %628 = vmatprep.subr.mxu0 0.0
        %629 = vmatpush1.msra.mxu0 %v198
        %630 = vmatprep.subr.mxu0 0.0
        %631 = vmatpush1.msra.mxu0 %v199
        %632 = vmatprep.subr.mxu0 0.0
        %633 = vmatpush1.msra.mxu0 %v200
        %634 = vmatprep.subr.mxu0 0.0
        %635 = vmatpush1.msra.mxu0 %v201
        %636 = vmatprep.subr.mxu0 0.0
        %637 = vmatpush1.msra.mxu0 %v202
        %638 = vmatprep.subr.mxu0 0.0
        %639 = vmatpush1.msra.mxu0 %v203
        %640 = vmatprep.subr.mxu0 0.0
        %641 = vmatpush1.msra.mxu0 %v204
        %642 = vmatprep.subr.mxu0 0.0
        %643 = vmatpush1.msra.mxu0 %v205
        %644 = vmatprep.subr.mxu0 0.0
        %645 = vmatpush1.msra.mxu0 %v206
        %646 = vmatprep.subr.mxu0 0.0
        %647 = vmatpush1.msra.mxu0 %v207
        %648 = vmatprep.subr.mxu0 0.0
        %649 = vmatpush1.msra.mxu0 %v208
        %650 = vmatprep.subr.mxu0 0.0
        %651 = vmatpush1.msra.mxu0 %v209
        %652 = vmatprep.subr.mxu0 0.0
        %653 = vmatpush1.msra.mxu0 %v210
        %654 = vmatprep.subr.mxu0 0.0
        %655 = vmatpush1.msra.mxu0 %v211
        %656 = vmatprep.mubr.f32.mxu0 %v375
        %657 = vmatmul.mubr.f32.gmra.mrb[0].mxu0 %v374
        %v658 = vpop.f32.mrb[0].mxu0
        %v659 = vadd.f32 %v385, %v658
        %v660 = vpop.f32.mrb[0].mxu0
        %661 = vmatprep.mubr.f32.mxu0 %v377
        %662 = vmatmul.mubr.f32.gmra.mrb[0].mxu0 %v376
        %v663 = vpop.f32.mrb[0].mxu0
        %v664 = vadd.f32 %v385, %v663
        %v665 = vpop.f32.mrb[0].mxu0
        %666 = vmatprep.mubr.f32.mxu0 %v379
        %667 = vmatmul.mubr.f32.gmra.mrb[0].mxu0 %v378
        %v668 = vpop.f32.mrb[0].mxu0
        %v669 = vadd.f32 %v385, %v668
        %v670 = vpop.f32.mrb[0].mxu0
        %671 = vmatprep.mubr.f32.mxu0 %v381
        %672 = vmatmul.mubr.f32.gmra.mrb[0].mxu0 %v380
        %v673 = vpop.f32.mrb[0].mxu0
        %v674 = vadd.f32 %v385, %v673
        %v675 = vpop.f32.mrb[0].mxu0
        %676 = vdwg.mxu0
        %v677 = vtanh.pop %v659
        %v678 = vtanh.pop %v664
        %v679 = vtanh.pop %v669
        %v680 = vtanh.pop %v674
        %v681 = vmul.f32 %v677, %v478
        %v682 = vmul.f32 %v678, %v478
        %v683 = vmul.f32 %v679, %v478
        %v684 = vmul.f32 %v680, %v478
        %685 = vadd.xlane.f32.xlu0 %v681
        %v686 = vpop.xlane.xlu0 %685
        %687 = vadd.xlane.f32.xlu0 %v682
        %v688 = vpop.xlane.xlu0 %687
        %689 = vadd.xlane.f32.xlu0 %v683
        %v690 = vpop.xlane.xlu0 %689
        %691 = vadd.xlane.f32.xlu0 %v684
        %v692 = vpop.xlane.xlu0 %691
        %v693 = vmax.f32 %v484, %v585
        %v694 = vmax.f32 %v486, %v587
        %v695 = vmax.f32 %v488, %v589
        %v696 = vmax.f32 %v490, %v591
        %v697 = vmax.f32 %v693, %v686
        %v698 = vmax.f32 %v694, %v688
        %v699 = vmax.f32 %v695, %v690
        %v700 = vmax.f32 %v696, %v692
        %v701 = vsub.f32 %v484, %v697
        %v702 = vsub.f32 %v486, %v698
        %v703 = vsub.f32 %v488, %v699
        %v704 = vsub.f32 %v490, %v700
        %v705 = vmul.f32 %v701, 1.442695
        %v706 = vpow.pop %v705
        %v707 = vmul.f32 %v702, 1.442695
        %v708 = vpow.pop %v707
        %v709 = vmul.f32 %v703, 1.442695
        %v710 = vpow.pop %v709
        %v711 = vmul.f32 %v704, 1.442695
        %v712 = vpow.pop %v711
        %v713 = vsub.f32 %v585, %v697
        %v714 = vsub.f32 %v587, %v698
        %v715 = vsub.f32 %v589, %v699
        %v716 = vsub.f32 %v591, %v700
        %v717 = vmul.f32 %v713, 1.442695
        %v718 = vpow.pop %v717
        %v719 = vmul.f32 %v714, 1.442695
        %v720 = vpow.pop %v719
        %v721 = vmul.f32 %v715, 1.442695
        %v722 = vpow.pop %v721
        %v723 = vmul.f32 %v716, 1.442695
        %v724 = vpow.pop %v723
        %v725 = vsub.f32 %v686, %v697
        %v726 = vsub.f32 %v688, %v698
        %v727 = vsub.f32 %v690, %v699
        %v728 = vsub.f32 %v692, %v700
        %v729 = vmul.f32 %v725, 1.442695
        %v730 = vpow.pop %v729
        %v731 = vmul.f32 %v726, 1.442695
        %v732 = vpow.pop %v731
        %v733 = vmul.f32 %v727, 1.442695
        %v734 = vpow.pop %v733
        %v735 = vmul.f32 %v728, 1.442695
        %v736 = vpow.pop %v735
        %v737 = vadd.f32 %v706, %v718
        %v738 = vadd.f32 %v708, %v720
        %v739 = vadd.f32 %v710, %v722
        %v740 = vadd.f32 %v712, %v724
        %v741 = vadd.f32 %v737, %v730
        %v742 = vadd.f32 %v738, %v732
        %v743 = vadd.f32 %v739, %v734
        %v744 = vadd.f32 %v740, %v736
        %v745 = vrcp.pop %v741
        %v746 = vmul.f32 1.0, %v745
        %v747 = vrcp.pop %v742
        %v748 = vmul.f32 1.0, %v747
        %v749 = vrcp.pop %v743
        %v750 = vmul.f32 1.0, %v749
        %v751 = vrcp.pop %v744
        %v752 = vmul.f32 1.0, %v751
        %v753 = vmul.f32 %v706, %v746
        %v754 = vmul.f32 %v708, %v748
        %v755 = vmul.f32 %v710, %v750
        %v756 = vmul.f32 %v712, %v752
        %v757 = vmul.f32 %v262, %v753
        %v758 = vmul.f32 %v263, %v753
        %v759 = vmul.f32 %v264, %v754
        %v760 = vmul.f32 %v265, %v754
        %v761 = vmul.f32 %v266, %v755
        %v762 = vmul.f32 %v267, %v755
        %v763 = vmul.f32 %v268, %v756
        %v764 = vmul.f32 %v269, %v756
        %v765 = vmul.f32 %v718, %v746
        %v766 = vmul.f32 %v720, %v748
        %v767 = vmul.f32 %v722, %v750
        %v768 = vmul.f32 %v724, %v752
        %v769 = vmul.f32 %v318, %v765
        %v770 = vmul.f32 %v319, %v765
        %v771 = vmul.f32 %v320, %v766
        %v772 = vmul.f32 %v321, %v766
        %v773 = vmul.f32 %v322, %v767
        %v774 = vmul.f32 %v323, %v767
        %v775 = vmul.f32 %v324, %v768
        %v776 = vmul.f32 %v325, %v768
        %v777 = vadd.f32 %v757, %v769
        %v778 = vadd.f32 %v758, %v770
        %v779 = vadd.f32 %v759, %v771
        %v780 = vadd.f32 %v760, %v772
        %v781 = vadd.f32 %v761, %v773
        %v782 = vadd.f32 %v762, %v774
        %v783 = vadd.f32 %v763, %v775
        %v784 = vadd.f32 %v764, %v776
        %v785 = vmul.f32 %v730, %v746
        %v786 = vmul.f32 %v732, %v748
        %v787 = vmul.f32 %v734, %v750
        %v788 = vmul.f32 %v736, %v752
        %v789 = vmul.f32 %v374, %v785
        %v790 = vmul.f32 %v375, %v785
        %v791 = vmul.f32 %v376, %v786
        %v792 = vmul.f32 %v377, %v786
        %v793 = vmul.f32 %v378, %v787
        %v794 = vmul.f32 %v379, %v787
        %v795 = vmul.f32 %v380, %v788
        %v796 = vmul.f32 %v381, %v788
        %v797 = vadd.f32 %v777, %v789
        %v798 = vadd.f32 %v778, %v790
        %v799 = vadd.f32 %v779, %v791
        %v800 = vadd.f32 %v780, %v792
        %v801 = vadd.f32 %v781, %v793
        %v802 = vadd.f32 %v782, %v794
        %v803 = vadd.f32 %v783, %v795
        %v804 = vadd.f32 %v784, %v796
        %805 = vst [vmem:[%s177] sm:$0xff] %v797
        %806 = vst [vmem:[%s177 + $0x8] sm:$0xff] %v798
        %807 = vst [vmem:[%s177 + $0x10] sm:$0xff] %v799
        %808 = vst [vmem:[%s177 + $0x18] sm:$0xff] %v800
        %809 = vst [vmem:[%s177 + $0x20] sm:$0xff] %v801
        %810 = vst [vmem:[%s177 + $0x28] sm:$0xff] %v802
        %811 = vst [vmem:[%s177 + $0x30] sm:$0xff] %v803
        %812 = vst [vmem:[%s177 + $0x38] sm:$0xff] %v804
        %s813 = sand.u32 %s75, 1
        %s814 = scalar_lea.sflag [#allocation4], %s813
        %s815 = sand.u32 %s75, 1
        %s816 = smul.addr %s815, 64
        %s817 = scalar_lea.vmem [#allocation7], %s816
        // Predicated region
        $region37: #{tpu_custom_call.1} parent=27 // pred_check
          %p818 = pneg %p85
        $region38: #{tpu_custom_call.1} parent=27 // pred_check_branch
          %820 = sbr.rel (%p818) target = $region40
        $region39: #{tpu_custom_call.1} parent=27 // pred_region
          %s821 = smul.u32 4, %s20
          %s823 = ssub.s32 1024, 1024
          %824 = vsyncadd %s814, %s823
          %s825 = smul.addr %s821, 2
          %s826 = smul.addr %s825, 128
          %s827 = scalar_lea.hbm %s2, %s826
          %s828 = sshll.u32 %s817, 4
          %s829 = int_to_ptr.vmem [resolvable:$true] %s828
          %834 = dma.vmem_to_hbm [thread:$0]  %s829, 1024, %s827, %s814, 256, 256, 16
        $region40: #{tpu_custom_call.1} parent=27 // pred_fallthru
          _
      $region28: #{tpu_custom_call.1} parent=5 // pred_fallthru
        _
      %p835 = scmp.le.s32.totalorder 2, %s15
      // Predicated region
      $region41: #{tpu_custom_call.1} parent=5 // pred_check
        %p836 = pneg %p835
      $region42: #{tpu_custom_call.1} parent=5 // pred_check_branch
        %838 = sbr.rel (%p836) target = $region44
      $region43: #{tpu_custom_call.1} parent=5 // pred_region
        %s839 = ssub.s32 %s15, 2
        // Predicated region
        $region45: #{tpu_custom_call.1} parent=43 // pred_check
          %p840 = pneg %p91
        $region46: #{tpu_custom_call.1} parent=43 // pred_check_branch
          %842 = sbr.rel (%p840) target = $region48
        $region47: #{tpu_custom_call.1} parent=43 // pred_region
          %s843 = sand.u32 %s76, 1
          %s844 = scalar_lea.sflag [#allocation4], %s843
          %s845 = sand.u32 %s76, 1
          %s846 = smul.addr %s845, 64
          %s847 = scalar_lea.vmem [#allocation7], %s846
          %848 = dma.done %s844, 1024
        $region48: #{tpu_custom_call.1} parent=43 // pred_fallthru
          _
      $region44: #{tpu_custom_call.1} parent=5 // pred_fallthru
        _
    $region6: #{tpu_custom_call.1} parent=1 // loop_footer
      %s19 = sadd.s32 1, %s15
    $region7: #{tpu_custom_call.1} parent=1 // loop_footer_branch
      %14 = sbr.rel target = $region3
    $region8: #{tpu_custom_call.1} parent=1 // loop_exit
      _
    %849 = vsyncpa [#allocation3], 1
    %s850 = scalar_lea.sflag [#allocation3], 1
    %851 = vsyncpa %s850, 1
    %852 = vsyncpa [#allocation6], 1
    %853 = vsyncpa [#allocation4], 1
    %s854 = scalar_lea.sflag [#allocation4], 1
    %855 = vsyncpa %s854, 1

</llo_original>
